<compile_context>
chip_gen: v6e
topology: v6e:2x2x1
jax: 0.10.0
libtpu: 0.0.40
codegen_flags: <defaults>
</compile_context>

<pallas_src>
import functools
import math

import jax
import jax.numpy as jnp
from jax.experimental import pallas as pl
from jax.experimental.pallas import tpu as pltpu


# ------------------------------ Pallas kernels -------------------------------
def _pe_add_kernel(x_ref, pe_ref, o_ref):
    # x_ref / o_ref: [B, t_tile, D]; pe_ref: [t_tile, D] (trailing-dim broadcast).
    o_ref[...] = (x_ref[...].astype(jnp.float32)
                  + pe_ref[...].astype(jnp.float32)).astype(o_ref.dtype)


def _pe_add_flat_kernel(x_ref, pe_ref, o_ref):
    # x_ref / o_ref: [B, f_tile]; pe_ref: [1, f_tile] (trailing-dim broadcast).
    o_ref[...] = (x_ref[...].astype(jnp.float32)
                  + pe_ref[...].astype(jnp.float32)).astype(o_ref.dtype)


# ------------------------------ tile selection -------------------------------
@functools.lru_cache(maxsize=1)
def _default_vmem_budget():
    """Generation-aware budget (bytes) for the pipelined block buffers."""
    try:
        cap = int(pltpu.get_tpu_info().vmem_capacity_bytes)
    except Exception:
        cap = 64 << 20  # conservative fallback (v7x per-TC physical VMEM)
    # ~half of physical VMEM for blocks: 64 MiB on v5e/v6e, 32 MiB on v7x.
    return int(min(cap // 2, 64 << 20))


def _sublane_multiple(itemsize):
    # f32 -> 8, bf16 -> 16, int8/fp8 -> 32 (sub-32-bit dtypes pack along sublanes).
    return max(8, 32 // max(int(itemsize), 1))


def _pick_t_tile(B, T, D, itemsize, budget_bytes):
    """Largest sequence tile whose double-buffered blocks fit the VMEM budget."""
    # Per grid step (double-buffered): x block + out block + pe block.
    bytes_per_row = (2 * B + 1) * D * itemsize * 2
    t_tile = min(T, max(1, budget_bytes // max(bytes_per_row, 1)))
    sub = _sublane_multiple(itemsize)
    if t_tile < T:
        t_tile = max(sub, (t_tile // sub) * sub)
    elif T >= 2 * sub:
        # Whole sequence fits in one tile: split so v7x's two TCs both get work.
        half = -(-T // 2)
        t_tile = max(sub, -(-half // sub) * sub)
    return int(min(t_tile, T))


def _pick_flat_tile(B, F, itemsize, budget_bytes):
    """Largest lane-dense (multiple of 128) tile of the flattened T*D axis."""
    bytes_per_col = (2 * B + 1) * itemsize * 2
    tile = min(F, max(128, budget_bytes // max(bytes_per_col, 1)))
    if tile < F:
        tile = max(128, (tile // 128) * 128)
    elif F >= 256:
        half = -(-F // 2)
        tile = max(128, -(-half // 128) * 128)
    return int(min(tile, F))


# --------------------------------- wrapper -----------------------------------
@functools.partial(jax.jit, static_argnames=("vmem_budget_bytes",))
def positional_encoding_forward(x, pe, vmem_budget_bytes=None):
    """out = x + pe[:T]  (dropout is the identity in eval mode)."""
    B, T, D = x.shape
    max_len, d_model = pe.shape
    if d_model != D:
        raise ValueError(f"d_model mismatch: x has {D}, pe has {d_model}")
    if T > max_len:
        raise ValueError(f"seq_len {T} exceeds positional-encoding max_len {max_len}")

    budget = int(vmem_budget_bytes) if vmem_budget_bytes is not None \
        else _default_vmem_budget()
    itemsize = jnp.dtype(x.dtype).itemsize
    cparams = pltpu.CompilerParams(
        dimension_semantics=("parallel",),
        vmem_limit_bytes=int(min(budget + (4 << 20), 128 << 20)),
    )

    if D >= 128:
        # d_model already lane-dense: tile over the sequence axis, full (B, D).
        t_tile = _pick_t_tile(B, T, D, itemsize, budget)
        grid = (pl.cdiv(T, t_tile),)
        return pl.pallas_call(
            _pe_add_kernel,
            out_shape=jax.ShapeDtypeStruct((B, T, D), x.dtype),
            grid=grid,
            in_specs=[
                pl.BlockSpec((B, t_tile, D), lambda t: (0, t, 0)),  # x
                pl.BlockSpec((t_tile, D), lambda t: (t, 0)),        # full pe buffer
            ],
            out_specs=pl.BlockSpec((B, t_tile, D), lambda t: (0, t, 0)),
            compiler_params=cparams,
        )(x, pe)

    # d_model < 128: flatten (T, D) -> a lane-dense F = T*D axis so stores are
    # unmasked full-vreg vst instead of masked partial stores at D lanes.
    F = T * D
    x_flat = x.reshape(B, F)                 # contiguous merge: no-copy under XLA
    pe_flat = pe.reshape(1, max_len * D)     # full buffer, same flat indexing
    f_tile = _pick_flat_tile(B, F, itemsize, budget)
    grid = (pl.cdiv(F, f_tile),)
    out_flat = pl.pallas_call(
        _pe_add_flat_kernel,
        out_shape=jax.ShapeDtypeStruct((B, F), x.dtype),
        grid=grid,
        in_specs=[
            pl.BlockSpec((B, f_tile), lambda i: (0, i)),   # x (flattened)
            pl.BlockSpec((1, f_tile), lambda i: (0, i)),   # pe (flattened, bcast over B)
        ],
        out_specs=pl.BlockSpec((B, f_tile), lambda i: (0, i)),
        compiler_params=cparams,
    )(x_flat, pe_flat)
    return out_flat.reshape(B, T, D)


# ----------------------- pe buffer ("init" in PyTorch) -----------------------
def make_positional_encoding(d_model, max_len=5000, dtype=jnp.float32):
    position = jnp.arange(max_len, dtype=jnp.float32)[:, None]            # [L, 1]
    div_term = jnp.exp(jnp.arange(0, d_model, 2, dtype=jnp.float32)
                       * (-math.log(10000.0) / d_model))                  # [D/2]
    angles = position * div_term                                          # [L, D/2]
    pe = jnp.zeros((max_len, d_model), jnp.float32)
    pe = pe.at[:, 0::2].set(jnp.sin(angles))
    pe = pe.at[:, 1::2].set(jnp.cos(angles))
    # Store in the model dtype so the kernel never needs a wrapper-side cast pass.
    return pe.astype(dtype)


# ---------------------------- pure-JAX reference -----------------------------
def reference_forward(x, pe):
    return (x.astype(jnp.float32)
            + pe[None, : x.shape[1], :].astype(jnp.float32)).astype(x.dtype)


# -------------------------------- init & main --------------------------------
if __name__ == "__main__":
    B, T, D = 2, 8, 32          # batch, seq_len, d_model
    max_len = 64

    key = jax.random.PRNGKey(0)
    x = jax.random.normal(key, (B, T, D), jnp.float32)
    pe = make_positional_encoding(D, max_len, dtype=x.dtype)

    out = positional_encoding_forward(x, pe)
    jax.block_until_ready(out)

    ref = reference_forward(x, pe)
    assert out.shape == (B, T, D)
    assert jnp.allclose(out, ref, atol=1e-6, rtol=1e-6)

    print("KERNEL_OK")
</pallas_src>

<mosaic_0001>
module attributes {stable_mosaic.version = 11 : i64} {
  func.func @_pe_add_flat_kernel(%arg0: i32, %arg1: memref<2x128xf32, #tpu.memory_space<vmem>>, %arg2: memref<1x128xf32, #tpu.memory_space<vmem>>, %arg3: memref<2x128xf32, #tpu.memory_space<vmem>>) attributes {dimension_semantics = [#tpu.dimension_semantics<parallel>], iteration_bounds = array<i64: 2>, scalar_prefetch = 0 : i64, scratch_operands = 0 : i64, tpu.core_type = #tpu.core_type<tc>, window_params = [{transform_indices = @transform_0, window_bounds = array<i64: 2, 128>}, {transform_indices = @transform_1, window_bounds = array<i64: 1, 128>}, {transform_indices = @transform_2, window_bounds = array<i64: 2, 128>}]} {
    %c0 = arith.constant 0 : index
    %c0_0 = arith.constant 0 : index
    %0 = vector.load %arg1[%c0, %c0_0] : memref<2x128xf32, #tpu.memory_space<vmem>>, vector<2x128xf32>
    %c0_1 = arith.constant 0 : index
    %c0_2 = arith.constant 0 : index
    %1 = vector.load %arg2[%c0_1, %c0_2] : memref<1x128xf32, #tpu.memory_space<vmem>>, vector<1x128xf32>
    %2 = vector.broadcast %1 : vector<1x128xf32> to vector<2x128xf32>
    %3 = arith.addf %0, %2 : vector<2x128xf32>
    %c0_3 = arith.constant 0 : index
    %c0_4 = arith.constant 0 : index
    %4 = vector.load %arg3[%c0_3, %c0_4] : memref<2x128xf32, #tpu.memory_space<vmem>>, vector<2x128xf32>
    tpu.vector_store %arg3[%c0_3, %c0_4], %3 {strides = array<i32>} : memref<2x128xf32, #tpu.memory_space<vmem>>, vector<2x128xf32>,
    return
  }
  func.func @transform_0(%arg0: i32) -> (i32, i32) {
    %c0_i32 = arith.constant 0 : i32
    %c0_i32_0 = arith.constant 0 : i32
    return %c0_i32, %arg0 : i32, i32
  }
  func.func @transform_1(%arg0: i32) -> (i32, i32) {
    %c0_i32 = arith.constant 0 : i32
    %c0_i32_0 = arith.constant 0 : i32
    return %c0_i32, %arg0 : i32, i32
  }
  func.func @transform_2(%arg0: i32) -> (i32, i32) {
    %c0_i32 = arith.constant 0 : i32
    %c0_i32_0 = arith.constant 0 : i32
    return %c0_i32, %arg0 : i32, i32
  }
}

</mosaic_0001>

<llo_original>
// kernel: positional_encoding_forward.1
$region0: #{positional_encoding_forward.1}
  #allocation0 [shape = 'u32[]', space=smem, size = 0x4, offset = 0x4, fixed_abs, tag = 'smem constant byte address 0x4 - core index']
  #allocation1 [shape = 'u32[144,128]{1,0:T(1,128)}', space=vmem, size = 0x12000, scoped, tag = 'internal scratch']
  %s0 = inlined_call_operand.vmem [shape: f32[2,256], index: 0, kind: input, shape index: {}]
  %s1 = inlined_call_operand.vmem [shape: f32[1,2048], index: 1, kind: input, shape index: {}]
  %s2 = inlined_call_operand.vmem [shape: f32[2,256], index: 2, kind: output, shape index: {}]
  %s3 = sld [smem:[#allocation0]]
  $region41: #{positional_encoding_forward.1} parent=0
    _
  %s5 = ssub.s32 1, %s3
  %s6 = scalar_select 0, %s5, %s3
  loop: start=0, step=1, limit=4
  $region2: #{positional_encoding_forward.1} parent=0 // loop_pre_header
    _
  $region3: #{positional_encoding_forward.1} parent=0 // loop_header
    %s8 = sphi 0, %s12
    %p9 = scmp.ge.s32.totalorder %s8, 4
    %s18 = sphi 0, %s20
    %s21 = sphi 0, %s18
    %s22 = sphi 0, %s21
    %s38 = sphi 0, %s22
    %s44 = sphi 0, %s46
    %s47 = sphi 0, %s44
    %s48 = sphi 0, %s47
    %s64 = sphi 0, %s48
    %s70 = sphi 0, %s72
    %s73 = sphi 0, %s70
    %s74 = sphi 0, %s73
    %s90 = sphi 0, %s74
  $region4: #{positional_encoding_forward.1} parent=0 // loop_header_branch
    %11 = sbr.rel (%p9) target = $region8
  $region5: #{positional_encoding_forward.1} parent=0 // loop_body
    %s13 = ssub.s32 %s8, 1
    %s14 = ssub.s32 %s8, 2
    %s15 = sadd.s32 %s8, 1
    %s16 = ssub.s32 %s8, %s15
    %p17 = scmp.eq.s32.totalorder %s16, 0
    %s19 = sadd.s32 %s18, 1
    %s20 = scalar_select %p17, %s18, %s19
    %p23 = pneg %p17
    %p24 = scmp.eq.s32.totalorder %s8, 1
    %p25 = por %p23, %p24
    %p26 = scmp.ne.s32.totalorder %s18, %s21
    %p27 = scmp.eq.s32.totalorder %s8, 0
    %p28 = por %p26, %p27
    %p29 = scmp.ne.s32.totalorder %s18, %s21
    %p30 = scmp.eq.s32.totalorder %s13, 1
    %p31 = por %p29, %p30
    %p32 = scmp.ne.s32.totalorder %s21, %s22
    %p33 = scmp.eq.s32.totalorder %s13, 0
    %p34 = por %p32, %p33
    %p35 = scmp.ne.s32.totalorder %s21, %s22
    %p36 = scmp.eq.s32.totalorder %s14, 1
    %p37 = por %p35, %p36
    %p39 = scmp.ne.s32.totalorder %s22, %s38
    %p40 = scmp.eq.s32.totalorder %s14, 0
    %p41 = por %p39, %p40
    %s42 = ssub.s32 %s8, %s15
    %p43 = scmp.eq.s32.totalorder %s42, 0
    %s45 = sadd.s32 %s44, 1
    %s46 = scalar_select %p43, %s44, %s45
    %p49 = pneg %p43
    %p50 = scmp.eq.s32.totalorder %s8, 1
    %p51 = por %p49, %p50
    %p52 = scmp.ne.s32.totalorder %s44, %s47
    %p53 = scmp.eq.s32.totalorder %s8, 0
    %p54 = por %p52, %p53
    %p55 = scmp.ne.s32.totalorder %s44, %s47
    %p56 = scmp.eq.s32.totalorder %s13, 1
    %p57 = por %p55, %p56
    %p58 = scmp.ne.s32.totalorder %s47, %s48
    %p59 = scmp.eq.s32.totalorder %s13, 0
    %p60 = por %p58, %p59
    %p61 = scmp.ne.s32.totalorder %s47, %s48
    %p62 = scmp.eq.s32.totalorder %s14, 1
    %p63 = por %p61, %p62
    %p65 = scmp.ne.s32.totalorder %s48, %s64
    %p66 = scmp.eq.s32.totalorder %s14, 0
    %p67 = por %p65, %p66
    %s68 = ssub.s32 %s8, %s15
    %p69 = scmp.eq.s32.totalorder %s68, 0
    %s71 = sadd.s32 %s70, 1
    %s72 = scalar_select %p69, %s70, %s71
    %p75 = pneg %p69
    %p76 = scmp.eq.s32.totalorder %s8, 1
    %p77 = por %p75, %p76
    %p78 = scmp.ne.s32.totalorder %s70, %s73
    %p79 = scmp.eq.s32.totalorder %s8, 0
    %p80 = por %p78, %p79
    %p81 = scmp.ne.s32.totalorder %s70, %s73
    %p82 = scmp.eq.s32.totalorder %s13, 1
    %p83 = por %p81, %p82
    %p84 = scmp.ne.s32.totalorder %s73, %s74
    %p85 = scmp.eq.s32.totalorder %s13, 0
    %p86 = por %p84, %p85
    %p87 = scmp.ne.s32.totalorder %s73, %s74
    %p88 = scmp.eq.s32.totalorder %s14, 1
    %p89 = por %p87, %p88
    %p91 = scmp.ne.s32.totalorder %s74, %s90
    %p92 = scmp.eq.s32.totalorder %s14, 0
    %p93 = por %p91, %p92
    %p94 = scmp.le.s32.totalorder 1, %s8
    %p95 = scmp.lt.s32.totalorder %s8, 3
    %p96 = pnand %p94, %p95
    %p97 = pneg %p96
    // Predicated region
    $region9: #{positional_encoding_forward.1} parent=5 // pred_check
      _
    $region10: #{positional_encoding_forward.1} parent=5 // pred_check_branch
      %99 = sbr.rel (%p96) target = $region12
    $region11: #{positional_encoding_forward.1} parent=5 // pred_region
      %s100 = ssub.s32 %s8, 1
    $region12: #{positional_encoding_forward.1} parent=5 // pred_fallthru
      _
    %p101 = scmp.lt.s32.totalorder %s8, 2
    // Predicated region
    $region13: #{positional_encoding_forward.1} parent=5 // pred_check
      %p102 = pneg %p101
    $region14: #{positional_encoding_forward.1} parent=5 // pred_check_branch
      %104 = sbr.rel (%p102) target = $region16
    $region15: #{positional_encoding_forward.1} parent=5 // pred_region
      // Predicated region
      $region17: #{positional_encoding_forward.1} parent=15 // pred_check
        %p105 = pneg %p28
      $region18: #{positional_encoding_forward.1} parent=15 // pred_check_branch
        %107 = sbr.rel (%p105) target = $region20
      $region19: #{positional_encoding_forward.1} parent=15 // pred_region
        %p108 = scmp.lt.s32.totalorder %s8, 1
        %s109 = scalar_select %p108, %s8, 1
        %s110 = smul.addr %s109, 2
        %s111 = scalar_lea.vmem %s0, %s110
      $region20: #{positional_encoding_forward.1} parent=15 // pred_fallthru
        _
      // Predicated region
      $region21: #{positional_encoding_forward.1} parent=15 // pred_check
        %p112 = pneg %p54
      $region22: #{positional_encoding_forward.1} parent=15 // pred_check_branch
        %114 = sbr.rel (%p112) target = $region24
      $region23: #{positional_encoding_forward.1} parent=15 // pred_region
        %p115 = scmp.lt.s32.totalorder %s8, 15
        %s116 = scalar_select %p115, %s8, 15
        %s117 = scalar_lea.vmem %s1, %s116
      $region24: #{positional_encoding_forward.1} parent=15 // pred_fallthru
        _
    $region16: #{positional_encoding_forward.1} parent=5 // pred_fallthru
      _
    %p118 = scmp.le.s32.totalorder 1, %s8
    %p119 = scmp.lt.s32.totalorder %s8, 3
    %p120 = pnand %p118, %p119
    %p121 = pneg %p120
    // Predicated region
    $region25: #{positional_encoding_forward.1} parent=5 // pred_check
      _
    $region26: #{positional_encoding_forward.1} parent=5 // pred_check_branch
      %123 = sbr.rel (%p120) target = $region28
    $region27: #{positional_encoding_forward.1} parent=5 // pred_region
      %s124 = ssub.s32 %s8, 1
      %p125 = scmp.lt.s32.totalorder %s13, 1
      %s126 = scalar_select %p125, %s13, 1
      %s127 = smul.addr %s126, 2
      %s128 = scalar_lea.vmem %s0, %s127
      %p129 = pneg %p34
      %p130 = pneg %p31
      %p131 = scmp.lt.s32.totalorder %s13, 15
      %s132 = scalar_select %p131, %s13, 15
      %s133 = scalar_lea.vmem %s1, %s132
      %p134 = pneg %p60
      %p135 = pneg %p57
      %p136 = pneg %p86
      %p137 = pneg %p83
      %p138 = scmp.lt.s32.totalorder %s13, 1
      %s139 = scalar_select %p138, %s13, 1
      %s140 = smul.addr %s139, 2
      %s141 = scalar_lea.vmem %s2, %s140
      %p142 = scmp.lt.s32.totalorder %s13, 1
      %s143 = scalar_select %p142, %s13, 1
      %s144 = smul.addr %s143, 2
      %s145 = scalar_lea.vmem %s0, %s144
      %p146 = scmp.lt.s32.totalorder %s13, 15
      %s147 = scalar_select %p146, %s13, 15
      %s148 = scalar_lea.vmem %s1, %s147
      %p149 = scmp.lt.s32.totalorder %s13, 1
      %s150 = scalar_select %p149, %s13, 1
      %s151 = smul.addr %s150, 2
      %s152 = scalar_lea.vmem %s2, %s151
      %v153 = vld [vmem:[%s145] sm:$0x3]
      %v154 = vld [vmem:[%s148] sm:$0x1]
      %v156 = vlaneseq
      %v157 = vshrl.u32 %v156, 7
      %v158 = vsub.s32 0, %v157
      %v159 = vrot.slane %v154, %v158
      %v161 = vadd.f32 %v153, %v159
      %162 = vst [vmem:[%s152] sm:$0x3] %v161
      %p163 = scmp.lt.s32.totalorder %s13, 1
      %s164 = scalar_select %p163, %s13, 1
      %s165 = smul.addr %s164, 2
      %s166 = scalar_lea.vmem %s2, %s165
      // Predicated region
      $region29: #{positional_encoding_forward.1} parent=27 // pred_check
        %p167 = pneg %p83
      $region30: #{positional_encoding_forward.1} parent=27 // pred_check_branch
        %169 = sbr.rel (%p167) target = $region32
      $region31: #{positional_encoding_forward.1} parent=27 // pred_region
        _
      $region32: #{positional_encoding_forward.1} parent=27 // pred_fallthru
        _
    $region28: #{positional_encoding_forward.1} parent=5 // pred_fallthru
      _
    %p170 = scmp.le.s32.totalorder 2, %s8
    // Predicated region
    $region33: #{positional_encoding_forward.1} parent=5 // pred_check
      %p171 = pneg %p170
    $region34: #{positional_encoding_forward.1} parent=5 // pred_check_branch
      %173 = sbr.rel (%p171) target = $region36
    $region35: #{positional_encoding_forward.1} parent=5 // pred_region
      %s174 = ssub.s32 %s8, 2
      // Predicated region
      $region37: #{positional_encoding_forward.1} parent=35 // pred_check
        %p175 = pneg %p89
      $region38: #{positional_encoding_forward.1} parent=35 // pred_check_branch
        %177 = sbr.rel (%p175) target = $region40
      $region39: #{positional_encoding_forward.1} parent=35 // pred_region
        %p178 = scmp.lt.s32.totalorder %s14, 1
        %s179 = scalar_select %p178, %s14, 1
        %s180 = smul.addr %s179, 2
        %s181 = scalar_lea.vmem %s2, %s180
      $region40: #{positional_encoding_forward.1} parent=35 // pred_fallthru
        _
    $region36: #{positional_encoding_forward.1} parent=5 // pred_fallthru
      _
  $region6: #{positional_encoding_forward.1} parent=0 // loop_footer
    %s12 = sadd.s32 1, %s8
  $region7: #{positional_encoding_forward.1} parent=0 // loop_footer_branch
    %7 = sbr.rel target = $region3
  $region8: #{positional_encoding_forward.1} parent=0 // loop_exit
    _

</llo_original>
